<compile_context>
chip_gen: v7x
topology: tpu7x:2x2x1
jax: 0.10.0
libtpu: 0.0.40
codegen_flags: <defaults>
</compile_context>

<pallas_src>
import functools

import jax
import jax.numpy as jnp
from jax.experimental import pallas as pl
from jax.experimental.pallas import tpu as pltpu

EPS = 1e-5
LANE = 128


def _round_up(n, m):
    return ((n + m - 1) // m) * m


def _bn_train(h, gamma, beta):
    """Training-mode BatchNorm1d folded to one scale/shift FMA, one-pass stats."""
    inv_n = 1.0 / h.shape[0]
    s1 = jnp.sum(h, axis=0, keepdims=True)            # cross-sublane reduce (XLU)
    s2 = jnp.sum(h * h, axis=0, keepdims=True)        # issued together with s1
    mean = s1 * inv_n
    var = jnp.maximum(s2 * inv_n - mean * mean, 0.0)   # guard tiny negatives
    scale = gamma * jax.lax.rsqrt(var + EPS)           # rsqrt -> EUP slot
    shift = beta - mean * scale
    return h * scale + shift


def _dot(x, w):
    """Canonical (B,K)@(K,N) MXU matmul; operands in the weight dtype, f32 acc."""
    return jnp.dot(x.astype(w.dtype), w, preferred_element_type=jnp.float32)


def _resblock_proj_kernel(x_ref, w1c_ref, g1c_ref, be1c_ref,
                          w2_ref, g2_ref, be2_ref, o_ref, *, f_pad):
    """Projection shortcut: main + shortcut x-matmuls fused into one GEMM."""
    x = x_ref[...]
    h_cat = _dot(x, w1c_ref[...])                         # (B, 2*f_pad), lane-dense
    h_cat = _bn_train(h_cat, g1c_ref[...], be1c_ref[...])  # per-column BN: halves independent
    h = jnp.maximum(h_cat[:, :f_pad], 0.0)                # main branch (128-aligned slice)
    s = h_cat[:, f_pad:]                                  # shortcut branch (no ReLU)
    h = _dot(h, w2_ref[...])
    h = _bn_train(h, g2_ref[...], be2_ref[...])
    o_ref[...] = jnp.maximum(h + s, 0.0)


def _resblock_id_kernel(x_ref, w1_ref, g1_ref, be1_ref,
                        w2_ref, g2_ref, be2_ref, o_ref, *, in_f, f_pad):
    """Identity shortcut (in_features == out_features); residual padded in-kernel."""
    x = x_ref[...]                                        # (B, in_f), unpadded
    h = _dot(x, w1_ref[...])
    h = _bn_train(h, g1_ref[...], be1_ref[...])
    h = jnp.maximum(h, 0.0)
    h = _dot(h, w2_ref[...])
    h = _bn_train(h, g2_ref[...], be2_ref[...])
    if in_f == f_pad:
        o_ref[...] = jnp.maximum(h + x, 0.0)
    else:
        # Padded lanes of h are exactly 0 (padded gamma/beta are 0), so the
        # residual only touches the first in_f lanes: one lane-dense store of
        # the full tile, then a small masked overwrite of the real lanes.
        o_ref[...] = jnp.maximum(h, 0.0)
        o_ref[:, :in_f] = jnp.maximum(h[:, :in_f] + x, 0.0)


def _vmem_spec(shape):
    # Everything fits VMEM as one full block (no grid).
    return pl.BlockSpec(shape, lambda: (0,) * len(shape))


def _pad_row(v, f_pad):
    """(F,) -> zero-padded (1, f_pad) row.  Padded gamma MUST be 0 so padded
    lanes map to 0 under BN (var=0 -> big rsqrt, but scale = gamma*rsqrt = 0)."""
    v = jnp.asarray(v, jnp.float32)
    return jnp.pad(v, (0, f_pad - v.shape[0])).reshape(1, f_pad)


def prepare_params(params, in_features, out_features, *, mxu_dtype=jnp.bfloat16):
    """One-time packing OUTSIDE the hot path: drop pre-BN biases (exact
    cancellation under training BN), transpose weights once to (K, N_pad),
    zero-pad out_features to a 128 multiple, concat main/shortcut first-layer
    weights, cast weights to the MXU dtype (bf16 by default)."""
    f_pad = max(LANE, _round_up(out_features, LANE))
    proj = in_features != out_features

    def pack_w(w, k_pad):
        wt = jnp.asarray(w, jnp.float32).T               # (out,in) -> (K,N), once
        wt = jnp.pad(wt, ((0, k_pad - wt.shape[0]), (0, f_pad - wt.shape[1])))
        return wt.astype(mxu_dtype)

    w2 = pack_w(params["w2"], k_pad=f_pad)
    g2, be2 = _pad_row(params["g2"], f_pad), _pad_row(params["be2"], f_pad)

    if proj:
        w1c = jnp.concatenate([pack_w(params["w1"], in_features),
                               pack_w(params["ws"], in_features)], axis=1)
        g1c = jnp.concatenate([_pad_row(params["g1"], f_pad),
                               _pad_row(params["gs"], f_pad)], axis=1)
        be1c = jnp.concatenate([_pad_row(params["be1"], f_pad),
                                _pad_row(params["bes"], f_pad)], axis=1)
        packed = (w1c, g1c, be1c, w2, g2, be2)
    else:
        w1 = pack_w(params["w1"], k_pad=in_features)
        g1, be1 = _pad_row(params["g1"], f_pad), _pad_row(params["be1"], f_pad)
        packed = (w1, g1, be1, w2, g2, be2)
    return packed, f_pad, proj


@functools.partial(jax.jit,
                   static_argnames=("in_features", "out_features", "f_pad", "proj"))
def residual_block_forward(x, packed, *, in_features, out_features, f_pad, proj):
    B = x.shape[0]
    if proj:
        kernel = functools.partial(_resblock_proj_kernel, f_pad=f_pad)
    else:
        kernel = functools.partial(_resblock_id_kernel, in_f=in_features, f_pad=f_pad)
    args = (x,) + packed

    n1 = (2 * f_pad) if proj else f_pad
    flops = 2 * B * in_features * n1 + 2 * B * f_pad * f_pad
    args_bytes = sum(a.size * a.dtype.itemsize for a in args)
    out_bytes = B * f_pad * 4
    cost = pl.CostEstimate(flops=flops,
                           transcendentals=n1 + f_pad,      # one rsqrt per BN column
                           bytes_accessed=args_bytes + out_bytes)

    # Derive the VMEM limit from actual buffer + activation sizes (with ~20%
    # headroom); keep the scoped default when the problem is small.
    act_bytes = B * (2 * n1 + 3 * f_pad) * 4
    needed = int(1.2 * (args_bytes + out_bytes + act_bytes)) + (2 << 20)
    vmem_limit = needed if needed > (32 << 20) else None

    out_pad = pl.pallas_call(
        kernel,
        out_shape=jax.ShapeDtypeStruct((B, f_pad), jnp.float32),
        in_specs=[_vmem_spec(a.shape) for a in args],
        out_specs=_vmem_spec((B, f_pad)),
        compiler_params=pltpu.CompilerParams(vmem_limit_bytes=vmem_limit),
        cost_estimate=cost,
    )(*args)
    return out_pad[:, :out_features]


def _reference(x, params, in_features, out_features):
    """Pure-JAX reference mirroring the PyTorch module (training-mode BN, biases)."""
    def bn(h, g, b):
        m = jnp.mean(h, axis=0, keepdims=True)
        v = jnp.mean((h - m) ** 2, axis=0, keepdims=True)
        return g * (h - m) / jnp.sqrt(v + EPS) + b

    h = x @ params["w1"].T + params["b1"]
    h = bn(h, params["g1"], params["be1"])
    h = jnp.maximum(h, 0.0)
    h = h @ params["w2"].T + params["b2"]
    h = bn(h, params["g2"], params["be2"])
    if in_features != out_features:
        s = x @ params["ws"].T + params["bs"]
        s = bn(s, params["gs"], params["bes"])
    else:
        s = x
    return jnp.maximum(h + s, 0.0)


def init_params(key, in_features, out_features):
    """Deterministic synthetic init (PyTorch-Linear-like uniform bounds)."""
    ks = jax.random.split(key, 6)
    lim1 = 1.0 / jnp.sqrt(in_features)
    lim2 = 1.0 / jnp.sqrt(out_features)
    p = {
        "w1": jax.random.uniform(ks[0], (out_features, in_features), jnp.float32, -lim1, lim1),
        "b1": jax.random.uniform(ks[1], (out_features,), jnp.float32, -lim1, lim1),
        "g1": jnp.ones((out_features,), jnp.float32),
        "be1": jnp.zeros((out_features,), jnp.float32),
        "w2": jax.random.uniform(ks[2], (out_features, out_features), jnp.float32, -lim2, lim2),
        "b2": jax.random.uniform(ks[3], (out_features,), jnp.float32, -lim2, lim2),
        "g2": jnp.ones((out_features,), jnp.float32),
        "be2": jnp.zeros((out_features,), jnp.float32),
    }
    if in_features != out_features:
        p["ws"] = jax.random.uniform(ks[4], (out_features, in_features), jnp.float32, -lim1, lim1)
        p["bs"] = jax.random.uniform(ks[5], (out_features,), jnp.float32, -lim1, lim1),
        p["bs"] = p["bs"][0]
        p["gs"] = jnp.ones((out_features,), jnp.float32)
        p["bes"] = jnp.zeros((out_features,), jnp.float32)
    return p


def _check(out, ref, atol, rtol, name):
    assert out.shape == ref.shape, f"{name}: bad shape {out.shape} vs {ref.shape}"
    assert jnp.allclose(out, ref, atol=atol, rtol=rtol), f"{name}: mismatch vs reference"


if __name__ == "__main__":
    key = jax.random.PRNGKey(0)
    kx, kp, kx2, kp2 = jax.random.split(key, 4)

    # Case 1: projection shortcut (in_features != out_features)
    B, IN_F, OUT_F = 8, 32, 64
    x = jax.random.normal(kx, (B, IN_F), jnp.float32)
    params = init_params(kp, IN_F, OUT_F)
    ref = _reference(x, params, IN_F, OUT_F)

    # f32 MXU path: tight check of the fused math
    packed, f_pad, proj = prepare_params(params, IN_F, OUT_F, mxu_dtype=jnp.float32)
    out = jax.block_until_ready(residual_block_forward(
        x, packed, in_features=IN_F, out_features=OUT_F, f_pad=f_pad, proj=proj))
    _check(out, ref, 1e-4, 1e-4, "proj/f32")

    # bf16 MXU path (default, fast): MXU-precision tolerance
    packed_bf, f_pad, proj = prepare_params(params, IN_F, OUT_F)
    out_bf = jax.block_until_ready(residual_block_forward(
        x, packed_bf, in_features=IN_F, out_features=OUT_F, f_pad=f_pad, proj=proj))
    _check(out_bf, ref, 1e-1, 1e-1, "proj/bf16")

    # Case 2: identity shortcut (in_features == out_features)
    F = 64
    x2 = jax.random.normal(kx2, (B, F), jnp.float32)
    params2 = init_params(kp2, F, F)
    ref2 = _reference(x2, params2, F, F)

    packed2, f_pad2, proj2 = prepare_params(params2, F, F, mxu_dtype=jnp.float32)
    out2 = jax.block_until_ready(residual_block_forward(
        x2, packed2, in_features=F, out_features=F, f_pad=f_pad2, proj=proj2))
    _check(out2, ref2, 1e-4, 1e-4, "id/f32")

    packed2_bf, f_pad2, proj2 = prepare_params(params2, F, F)
    out2_bf = jax.block_until_ready(residual_block_forward(
        x2, packed2_bf, in_features=F, out_features=F, f_pad=f_pad2, proj=proj2))
    _check(out2_bf, ref2, 1e-1, 1e-1, "id/bf16")

    print("KERNEL_OK")
</pallas_src>

<mosaic_0001>
module attributes {stable_mosaic.version = 11 : i64} {
  func.func @_resblock_proj_kernel(%arg0: memref<8x32xf32, #tpu.memory_space<vmem>>, %arg1: memref<32x256xf32, #tpu.memory_space<vmem>>, %arg2: memref<1x256xf32, #tpu.memory_space<vmem>>, %arg3: memref<1x256xf32, #tpu.memory_space<vmem>>, %arg4: memref<128x128xf32, #tpu.memory_space<vmem>>, %arg5: memref<1x128xf32, #tpu.memory_space<vmem>>, %arg6: memref<1x128xf32, #tpu.memory_space<vmem>>, %arg7: memref<8x128xf32, #tpu.memory_space<vmem>>) attributes {dimension_semantics = [], scalar_prefetch = 0 : i64, scratch_operands = 0 : i64, tpu.core_type = #tpu.core_type<tc>} {
    %c0 = arith.constant 0 : index
    %c0_0 = arith.constant 0 : index
    %0 = vector.load %arg0[%c0, %c0_0] : memref<8x32xf32, #tpu.memory_space<vmem>>, vector<8x32xf32>
    %c0_1 = arith.constant 0 : index
    %c0_2 = arith.constant 0 : index
    %1 = vector.load %arg1[%c0_1, %c0_2] : memref<32x256xf32, #tpu.memory_space<vmem>>, vector<32x256xf32>
    %cst = arith.constant dense<0.000000e+00> : vector<8x256xf32>
    %2 = tpu.matmul %0, %1, %cst {dimension_numbers = #tpu.dot_dimension_numbers<[1], [0], [0], [1], [0, 0, 1, 1], [], []>} : vector<8x32xf32>, vector<32x256xf32>, vector<8x256xf32> -> vector<8x256xf32>
    %c0_3 = arith.constant 0 : index
    %c0_4 = arith.constant 0 : index
    %3 = vector.load %arg2[%c0_3, %c0_4] : memref<1x256xf32, #tpu.memory_space<vmem>>, vector<1x256xf32>
    %c0_5 = arith.constant 0 : index
    %c0_6 = arith.constant 0 : index
    %4 = vector.load %arg3[%c0_5, %c0_6] : memref<1x256xf32, #tpu.memory_space<vmem>>, vector<1x256xf32>
    %cst_7 = arith.constant dense<0.000000e+00> : vector<256xf32>
    %5 = vector.multi_reduction <add>, %2, %cst_7 [0] : vector<8x256xf32> to vector<256xf32>
    %6 = vector.shape_cast %5 : vector<256xf32> to vector<1x256xf32>
    %7 = arith.mulf %2, %2 : vector<8x256xf32>
    %cst_8 = arith.constant dense<0.000000e+00> : vector<256xf32>
    %8 = vector.multi_reduction <add>, %7, %cst_8 [0] : vector<8x256xf32> to vector<256xf32>
    %9 = vector.shape_cast %8 : vector<256xf32> to vector<1x256xf32>
    %cst_9 = arith.constant 1.250000e-01 : f32
    %10 = vector.broadcast %cst_9 : f32 to vector<1x256xf32>
    %11 = arith.mulf %6, %10 : vector<1x256xf32>
    %cst_10 = arith.constant 1.250000e-01 : f32
    %12 = vector.broadcast %cst_10 : f32 to vector<1x256xf32>
    %13 = arith.mulf %9, %12 : vector<1x256xf32>
    %14 = arith.mulf %11, %11 : vector<1x256xf32>
    %15 = arith.subf %13, %14 : vector<1x256xf32>
    %cst_11 = arith.constant 0.000000e+00 : f32
    %16 = vector.broadcast %cst_11 : f32 to vector<1x256xf32>
    %17 = arith.maximumf %15, %16 : vector<1x256xf32>
    %cst_12 = arith.constant 9.99999974E-6 : f32
    %18 = vector.broadcast %cst_12 : f32 to vector<1x256xf32>
    %19 = arith.addf %17, %18 : vector<1x256xf32>
    %20 = math.rsqrt %19 : vector<1x256xf32>
    %21 = arith.mulf %3, %20 : vector<1x256xf32>
    %22 = arith.mulf %11, %21 : vector<1x256xf32>
    %23 = arith.subf %4, %22 : vector<1x256xf32>
    %24 = vector.broadcast %21 : vector<1x256xf32> to vector<8x256xf32>
    %25 = arith.mulf %2, %24 : vector<8x256xf32>
    %26 = vector.broadcast %23 : vector<1x256xf32> to vector<8x256xf32>
    %27 = arith.addf %25, %26 : vector<8x256xf32>
    %28 = vector.extract_strided_slice %27 {offsets = [0, 0], sizes = [8, 128], strides = [1, 1]} : vector<8x256xf32> to vector<8x128xf32>
    %cst_13 = arith.constant 0.000000e+00 : f32
    %29 = vector.broadcast %cst_13 : f32 to vector<8x128xf32>
    %30 = arith.maximumf %28, %29 : vector<8x128xf32>
    %31 = vector.extract_strided_slice %27 {offsets = [0, 128], sizes = [8, 128], strides = [1, 1]} : vector<8x256xf32> to vector<8x128xf32>
    %c0_14 = arith.constant 0 : index
    %c0_15 = arith.constant 0 : index
    %32 = vector.load %arg4[%c0_14, %c0_15] : memref<128x128xf32, #tpu.memory_space<vmem>>, vector<128x128xf32>
    %cst_16 = arith.constant dense<0.000000e+00> : vector<8x128xf32>
    %33 = tpu.matmul %30, %32, %cst_16 {dimension_numbers = #tpu.dot_dimension_numbers<[1], [0], [0], [1], [0, 0, 1, 1], [], []>} : vector<8x128xf32>, vector<128x128xf32>, vector<8x128xf32> -> vector<8x128xf32>
    %c0_17 = arith.constant 0 : index
    %c0_18 = arith.constant 0 : index
    %34 = vector.load %arg5[%c0_17, %c0_18] : memref<1x128xf32, #tpu.memory_space<vmem>>, vector<1x128xf32>
    %c0_19 = arith.constant 0 : index
    %c0_20 = arith.constant 0 : index
    %35 = vector.load %arg6[%c0_19, %c0_20] : memref<1x128xf32, #tpu.memory_space<vmem>>, vector<1x128xf32>
    %cst_21 = arith.constant dense<0.000000e+00> : vector<128xf32>
    %36 = vector.multi_reduction <add>, %33, %cst_21 [0] : vector<8x128xf32> to vector<128xf32>
    %37 = vector.shape_cast %36 : vector<128xf32> to vector<1x128xf32>
    %38 = arith.mulf %33, %33 : vector<8x128xf32>
    %cst_22 = arith.constant dense<0.000000e+00> : vector<128xf32>
    %39 = vector.multi_reduction <add>, %38, %cst_22 [0] : vector<8x128xf32> to vector<128xf32>
    %40 = vector.shape_cast %39 : vector<128xf32> to vector<1x128xf32>
    %cst_23 = arith.constant 1.250000e-01 : f32
    %41 = vector.broadcast %cst_23 : f32 to vector<1x128xf32>
    %42 = arith.mulf %37, %41 : vector<1x128xf32>
    %cst_24 = arith.constant 1.250000e-01 : f32
    %43 = vector.broadcast %cst_24 : f32 to vector<1x128xf32>
    %44 = arith.mulf %40, %43 : vector<1x128xf32>
    %45 = arith.mulf %42, %42 : vector<1x128xf32>
    %46 = arith.subf %44, %45 : vector<1x128xf32>
    %cst_25 = arith.constant 0.000000e+00 : f32
    %47 = vector.broadcast %cst_25 : f32 to vector<1x128xf32>
    %48 = arith.maximumf %46, %47 : vector<1x128xf32>
    %cst_26 = arith.constant 9.99999974E-6 : f32
    %49 = vector.broadcast %cst_26 : f32 to vector<1x128xf32>
    %50 = arith.addf %48, %49 : vector<1x128xf32>
    %51 = math.rsqrt %50 : vector<1x128xf32>
    %52 = arith.mulf %34, %51 : vector<1x128xf32>
    %53 = arith.mulf %42, %52 : vector<1x128xf32>
    %54 = arith.subf %35, %53 : vector<1x128xf32>
    %55 = vector.broadcast %52 : vector<1x128xf32> to vector<8x128xf32>
    %56 = arith.mulf %33, %55 : vector<8x128xf32>
    %57 = vector.broadcast %54 : vector<1x128xf32> to vector<8x128xf32>
    %58 = arith.addf %56, %57 : vector<8x128xf32>
    %59 = arith.addf %58, %31 : vector<8x128xf32>
    %cst_27 = arith.constant 0.000000e+00 : f32
    %60 = vector.broadcast %cst_27 : f32 to vector<8x128xf32>
    %61 = arith.maximumf %59, %60 : vector<8x128xf32>
    %c0_28 = arith.constant 0 : index
    %c0_29 = arith.constant 0 : index
    %62 = vector.load %arg7[%c0_28, %c0_29] : memref<8x128xf32, #tpu.memory_space<vmem>>, vector<8x128xf32>
    tpu.vector_store %arg7[%c0_28, %c0_29], %61 {strides = array<i32>} : memref<8x128xf32, #tpu.memory_space<vmem>>, vector<8x128xf32>,
    return
  }
}

</mosaic_0001>

<llo_original>
// kernel: residual_block_forward.1
$region0: #{residual_block_forward.1}
  #allocation0 [shape = 'u32[]', space=smem, size = 0x4, offset = 0x4, fixed_abs, tag = 'smem constant byte address 0x4 - core index']
  #allocation1 [shape = 'u32[144,128]{1,0:T(1,128)}', space=vmem, size = 0x12000, scoped, tag = 'internal scratch']
  %s0 = inlined_call_operand.hbm [shape: f32[8,32], index: 0, kind: input, shape index: {}]
  %s1 = inlined_call_operand.hbm [shape: f32[32,256], index: 1, kind: input, shape index: {}]
  %s2 = inlined_call_operand.vmem [shape: f32[1,256], index: 2, kind: input, shape index: {}]
  %s3 = inlined_call_operand.vmem [shape: f32[1,256], index: 3, kind: input, shape index: {}]
  %s4 = inlined_call_operand.hbm [shape: f32[128,128], index: 4, kind: input, shape index: {}]
  %s5 = inlined_call_operand.vmem [shape: f32[1,128], index: 5, kind: input, shape index: {}]
  %s6 = inlined_call_operand.vmem [shape: f32[1,128], index: 6, kind: input, shape index: {}]
  %s7 = inlined_call_operand.hbm [shape: f32[8,128], index: 7, kind: output, shape index: {}]
  %s8 = sld [smem:[#allocation0]]
  $region50: #{residual_block_forward.1} parent=0
    _
  %s10 = ssub.s32 1, %s8
  %s11 = scalar_select 0, %s10, %s8
  $region1: #{residual_block_forward.1} parent=0
    #allocation2 [shape = 'u8[4096]{0}', space=vmem, size = 0x1000, scoped, tag = 'input window, operand 0, single buffered']
    #allocation3 [shape = 's32[1]{0}', space=sflag, size = 0x4, scoped, tag = 'scoped memory for residual_block_forward.1']
    #allocation4 [shape = 's32[1]{0}', space=sflag, size = 0x4, scoped, tag = 'scoped memory for residual_block_forward.1']
    #allocation5 [shape = 'u8[32768]{0}', space=vmem, size = 0x8000, scoped, tag = 'input window, operand 1, single buffered']
    #allocation6 [shape = 's32[1]{0}', space=sflag, size = 0x4, scoped, tag = 'scoped memory for residual_block_forward.1']
    #allocation7 [shape = 'u8[65536]{0}', space=vmem, size = 0x10000, scoped, tag = 'input window, operand 4, single buffered']
    #allocation8 [shape = 'u8[4096]{0}', space=vmem, size = 0x1000, scoped, tag = 'output window, operand 0, single buffered']
    %12 = vsyncpa [#allocation3], 0
    %13 = vsyncpa [#allocation6], 0
    %14 = vsyncpa [#allocation4], 0
    // Predicated region
    $region2: #{residual_block_forward.1} parent=1 // pred_check
      _
    $region3: #{residual_block_forward.1} parent=1 // pred_check_branch
      %16 = sbr.rel (0) target = $region5
    $region4: #{residual_block_forward.1} parent=1 // pred_region
      %s18 = ssub.s32 128, 128
      %19 = vsyncadd [#allocation3], %s18
      %s21 = sshll.u32 [#allocation2], 4
      %s22 = int_to_ptr.vmem [resolvable:$true] %s21
      %24 = dma.hbm_to_vmem [thread:$0]  %s0, 128, %s22, [#allocation3]
    $region5: #{residual_block_forward.1} parent=1 // pred_fallthru
      _
    // Predicated region
    $region6: #{residual_block_forward.1} parent=1 // pred_check
      _
    $region7: #{residual_block_forward.1} parent=1 // pred_check_branch
      %26 = sbr.rel (0) target = $region9
    $region8: #{residual_block_forward.1} parent=1 // pred_region
      %s28 = ssub.s32 1024, 1024
      %29 = vsyncadd [#allocation6], %s28
      %s30 = sshll.u32 [#allocation5], 4
      %s31 = int_to_ptr.vmem [resolvable:$true] %s30
      %36 = dma.hbm_to_vmem [thread:$0]  %s1, 1024, %s31, [#allocation6], 256, 256, 16
    $region9: #{residual_block_forward.1} parent=1 // pred_fallthru
      _
    // Predicated region
    $region10: #{residual_block_forward.1} parent=1 // pred_check
      _
    $region11: #{residual_block_forward.1} parent=1 // pred_check_branch
      %38 = sbr.rel (0) target = $region13
    $region12: #{residual_block_forward.1} parent=1 // pred_region
      _
    $region13: #{residual_block_forward.1} parent=1 // pred_fallthru
      _
    // Predicated region
    $region14: #{residual_block_forward.1} parent=1 // pred_check
      _
    $region15: #{residual_block_forward.1} parent=1 // pred_check_branch
      %40 = sbr.rel (0) target = $region17
    $region16: #{residual_block_forward.1} parent=1 // pred_region
      _
    $region17: #{residual_block_forward.1} parent=1 // pred_fallthru
      _
    // Predicated region
    $region18: #{residual_block_forward.1} parent=1 // pred_check
      _
    $region19: #{residual_block_forward.1} parent=1 // pred_check_branch
      %42 = sbr.rel (0) target = $region21
    $region20: #{residual_block_forward.1} parent=1 // pred_region
      %s44 = ssub.s32 2048, 2048
      %45 = vsyncadd [#allocation6], %s44
      %s46 = sshll.u32 [#allocation7], 4
      %s47 = int_to_ptr.vmem [resolvable:$true] %s46
      %52 = dma.hbm_to_vmem [thread:$0]  %s4, 2048, %s47, [#allocation6], 128, 128, 8
    $region21: #{residual_block_forward.1} parent=1 // pred_fallthru
      _
    // Predicated region
    $region22: #{residual_block_forward.1} parent=1 // pred_check
      _
    $region23: #{residual_block_forward.1} parent=1 // pred_check_branch
      %54 = sbr.rel (0) target = $region25
    $region24: #{residual_block_forward.1} parent=1 // pred_region
      _
    $region25: #{residual_block_forward.1} parent=1 // pred_fallthru
      _
    // Predicated region
    $region26: #{residual_block_forward.1} parent=1 // pred_check
      _
    $region27: #{residual_block_forward.1} parent=1 // pred_check_branch
      %56 = sbr.rel (0) target = $region29
    $region28: #{residual_block_forward.1} parent=1 // pred_region
      _
    $region29: #{residual_block_forward.1} parent=1 // pred_fallthru
      _
    // Predicated region
    $region30: #{residual_block_forward.1} parent=1 // pred_check
      _
    $region31: #{residual_block_forward.1} parent=1 // pred_check_branch
      %58 = sbr.rel (0) target = $region33
    $region32: #{residual_block_forward.1} parent=1 // pred_region
      %59 = dma.done [#allocation3], 128
    $region33: #{residual_block_forward.1} parent=1 // pred_fallthru
      _
    // Predicated region
    $region34: #{residual_block_forward.1} parent=1 // pred_check
      _
    $region35: #{residual_block_forward.1} parent=1 // pred_check_branch
      %61 = sbr.rel (0) target = $region37
    $region36: #{residual_block_forward.1} parent=1 // pred_region
      %62 = dma.done [#allocation6], 1024
    $region37: #{residual_block_forward.1} parent=1 // pred_fallthru
      _
    // Predicated region
    $region38: #{residual_block_forward.1} parent=1 // pred_check
      _
    $region39: #{residual_block_forward.1} parent=1 // pred_check_branch
      %64 = sbr.rel (0) target = $region41
    $region40: #{residual_block_forward.1} parent=1 // pred_region
      %65 = dma.done [#allocation6], 2048
    $region41: #{residual_block_forward.1} parent=1 // pred_fallthru
      _
    %v66 = vld [vmem:[#allocation2] sm:$0xff]
    %v67 = vld [vmem:[#allocation5] sm:$0xff]
    %v68 = vld [vmem:[#allocation5 + $0x8] sm:$0xff]
    %v69 = vld [vmem:[#allocation5 + $0x10] sm:$0xff]
    %v70 = vld [vmem:[#allocation5 + $0x18] sm:$0xff]
    %v71 = vld [vmem:[#allocation5 + $0x20] sm:$0xff]
    %v72 = vld [vmem:[#allocation5 + $0x28] sm:$0xff]
    %v73 = vld [vmem:[#allocation5 + $0x30] sm:$0xff]
    %v74 = vld [vmem:[#allocation5 + $0x38] sm:$0xff]
    %vm75 = vcmask 261120
    %v77 = vsel %vm75, %v66, 0
    %79 = vmatprep.subr.mxu0 %v68
    %80 = vmatpush1.msra.mxu0 %v67
    %81 = vmatprep.subr.mxu0 %v70
    %82 = vmatpush1.msra.mxu0 %v69
    %83 = vmatprep.subr.mxu0 %v72
    %84 = vmatpush1.msra.mxu0 %v71
    %85 = vmatprep.subr.mxu0 %v74
    %86 = vmatpush1.msra.mxu0 %v73
    %87 = vmatprep.subr.mxu0 0.0
    %88 = vmatpush1.msra.mxu0 0.0
    %89 = vmatprep.subr.mxu0 0.0
    %90 = vmatpush1.msra.mxu0 0.0
    %91 = vmatprep.subr.mxu0 0.0
    %92 = vmatpush1.msra.mxu0 0.0
    %93 = vmatprep.subr.mxu0 0.0
    %94 = vmatpush1.msra.mxu0 0.0
    %95 = vmatprep.subr.mxu0 0.0
    %96 = vmatpush1.msra.mxu0 0.0
    %97 = vmatprep.subr.mxu0 0.0
    %98 = vmatpush1.msra.mxu0 0.0
    %99 = vmatprep.subr.mxu0 0.0
    %100 = vmatpush1.msra.mxu0 0.0
    %101 = vmatprep.subr.mxu0 0.0
    %102 = vmatpush1.msra.mxu0 0.0
    %103 = vmatprep.subr.mxu0 0.0
    %104 = vmatpush1.msra.mxu0 0.0
    %105 = vmatprep.subr.mxu0 0.0
    %106 = vmatpush1.msra.mxu0 0.0
    %107 = vmatprep.subr.mxu0 0.0
    %108 = vmatpush1.msra.mxu0 0.0
    %109 = vmatprep.subr.mxu0 0.0
    %110 = vmatpush1.msra.mxu0 0.0
    %111 = vmatprep.subr.mxu0 0.0
    %112 = vmatpush1.msra.mxu0 0.0
    %113 = vmatprep.subr.mxu0 0.0
    %114 = vmatpush1.msra.mxu0 0.0
    %115 = vmatprep.subr.mxu0 0.0
    %116 = vmatpush1.msra.mxu0 0.0
    %117 = vmatprep.subr.mxu0 0.0
    %118 = vmatpush1.msra.mxu0 0.0
    %119 = vmatprep.subr.mxu0 0.0
    %120 = vmatpush1.msra.mxu0 0.0
    %121 = vmatprep.subr.mxu0 0.0
    %122 = vmatpush1.msra.mxu0 0.0
    %123 = vmatprep.subr.mxu0 0.0
    %124 = vmatpush1.msra.mxu0 0.0
    %125 = vmatprep.subr.mxu0 0.0
    %126 = vmatpush1.msra.mxu0 0.0
    %127 = vmatprep.subr.mxu0 0.0
    %128 = vmatpush1.msra.mxu0 0.0
    %129 = vmatprep.subr.mxu0 0.0
    %130 = vmatpush1.msra.mxu0 0.0
    %131 = vmatprep.subr.mxu0 0.0
    %132 = vmatpush1.msra.mxu0 0.0
    %133 = vmatprep.subr.mxu0 0.0
    %134 = vmatpush1.msra.mxu0 0.0
    %135 = vmatprep.subr.mxu0 0.0
    %136 = vmatpush1.msra.mxu0 0.0
    %137 = vmatprep.subr.mxu0 0.0
    %138 = vmatpush1.msra.mxu0 0.0
    %139 = vmatprep.subr.mxu0 0.0
    %140 = vmatpush1.msra.mxu0 0.0
    %141 = vmatprep.subr.mxu0 0.0
    %142 = vmatpush1.msra.mxu0 0.0
    %143 = vmatprep.mubr.f32.mxu0 0.0
    %144 = vmatmul.mubr.f32.gmra.mrb[0].mxu0 %v77
    %v145 = vpop.f32.mrb[0].mxu0
    %v146 = vadd.f32 0.0, %v145
    %v147 = vpop.f32.mrb[0].mxu0
    %v148 = vadd.f32 0.0, %v147
    %149 = vdwg.mxu0
    %v150 = vld [vmem:[%s2] sm:$0x3]
    %v151 = vld [vmem:[%s3] sm:$0x3]
    %v152 = vrot.slane %v146, 4
    %v153 = vadd.f32 %v146, %v152
    %v154 = vrot.slane %v153, 2
    %v155 = vadd.f32 %v153, %v154
    %v156 = vrot.slane %v155, 1
    %v157 = vadd.f32 %v155, %v156
    %v158 = vrot.slane %v148, 4
    %v159 = vadd.f32 %v148, %v158
    %v160 = vrot.slane %v159, 2
    %v161 = vadd.f32 %v159, %v160
    %v162 = vrot.slane %v161, 1
    %v163 = vadd.f32 %v161, %v162
    %v164 = vmul.f32 %v146, %v146
    %v165 = vmul.f32 %v148, %v148
    %v166 = vrot.slane %v164, 4
    %v167 = vadd.f32 %v164, %v166
    %v168 = vrot.slane %v167, 2
    %v169 = vadd.f32 %v167, %v168
    %v170 = vrot.slane %v169, 1
    %v171 = vadd.f32 %v169, %v170
    %v172 = vrot.slane %v165, 4
    %v173 = vadd.f32 %v165, %v172
    %v174 = vrot.slane %v173, 2
    %v175 = vadd.f32 %v173, %v174
    %v176 = vrot.slane %v175, 1
    %v177 = vadd.f32 %v175, %v176
    %v178 = vmul.f32 %v157, 0.125
    %v179 = vmul.f32 %v163, 0.125
    %v180 = vmul.f32 %v171, 0.125
    %v181 = vmul.f32 %v177, 0.125
    %v182 = vmul.f32 %v178, %v178
    %v183 = vmul.f32 %v179, %v179
    %v184 = vsub.f32 %v180, %v182
    %v185 = vsub.f32 %v181, %v183
    %v186 = vmax.f32 %v184, 0.0
    %v187 = vmax.f32 %v185, 0.0
    %v188 = vadd.f32 %v186, 1e-05
    %v189 = vadd.f32 %v187, 1e-05
    %v190 = vrsqrt.pop %v188
    %v191 = vrsqrt.pop %v189
    %v194 = vcombine.low %v190, %v191
    %v196 = vunpack.c.l.s4 1966171168
    %v197 = vunpack.c.0.s8 %v196
    %v198 = vlaneseq
    %v199 = vshrl.u32 %v198, 7
    %v200 = vsub.s32 %v197, %v199
    %v201 = vrot.slane %v194, %v200
    %v203 = vunpack.c.l.s4 1966171168
    %v204 = vunpack.c.0.s8 %v203
    %v205 = vlaneseq
    %v206 = vshrl.u32 %v205, 7
    %v207 = vsub.s32 %v204, %v206
    %v208 = vrot.slane %v201, %v207
    %v210 = vmul.f32 %v150, %v208
    %v212 = vlaneseq
    %v213 = vshrl.u32 %v212, 7
    %v214 = vsub.s32 0, %v213
    %v215 = vrot.slane %v210, %v214
    %v216 = vlaneseq
    %v217 = vshrl.u32 %v216, 7
    %v218 = vsub.s32 1, %v217
    %v219 = vrot.slane %v210, %v218
    %v222 = vmul.f32 %v178, %v215
    %v223 = vmul.f32 %v179, %v219
    %v226 = vcombine.low %v222, %v223
    %v228 = vunpack.c.l.s4 1966171168
    %v229 = vunpack.c.0.s8 %v228
    %v230 = vlaneseq
    %v231 = vshrl.u32 %v230, 7
    %v232 = vsub.s32 %v229, %v231
    %v233 = vrot.slane %v226, %v232
    %v235 = vunpack.c.l.s4 1966171168
    %v236 = vunpack.c.0.s8 %v235
    %v237 = vlaneseq
    %v238 = vshrl.u32 %v237, 7
    %v239 = vsub.s32 %v236, %v238
    %v240 = vrot.slane %v233, %v239
    %v242 = vsub.f32 %v151, %v240
    %v243 = vmul.f32 %v146, %v215
    %v244 = vmul.f32 %v148, %v219
    %v246 = vlaneseq
    %v247 = vshrl.u32 %v246, 7
    %v248 = vsub.s32 0, %v247
    %v249 = vrot.slane %v242, %v248
    %v250 = vlaneseq
    %v251 = vshrl.u32 %v250, 7
    %v252 = vsub.s32 1, %v251
    %v253 = vrot.slane %v242, %v252
    %v256 = vadd.f32 %v243, %v249
    %v257 = vadd.f32 %v244, %v253
    %v258 = vmax.f32 %v256, 0.0
    %v259 = vld [vmem:[#allocation7] sm:$0xff]
    %v260 = vld [vmem:[#allocation7 + $0x8] sm:$0xff]
    %v261 = vld [vmem:[#allocation7 + $0x10] sm:$0xff]
    %v262 = vld [vmem:[#allocation7 + $0x18] sm:$0xff]
    %v263 = vld [vmem:[#allocation7 + $0x20] sm:$0xff]
    %v264 = vld [vmem:[#allocation7 + $0x28] sm:$0xff]
    %v265 = vld [vmem:[#allocation7 + $0x30] sm:$0xff]
    %v266 = vld [vmem:[#allocation7 + $0x38] sm:$0xff]
    %v267 = vld [vmem:[#allocation7 + $0x40] sm:$0xff]
    %v268 = vld [vmem:[#allocation7 + $0x48] sm:$0xff]
    %v269 = vld [vmem:[#allocation7 + $0x50] sm:$0xff]
    %v270 = vld [vmem:[#allocation7 + $0x58] sm:$0xff]
    %v271 = vld [vmem:[#allocation7 + $0x60] sm:$0xff]
    %v272 = vld [vmem:[#allocation7 + $0x68] sm:$0xff]
    %v273 = vld [vmem:[#allocation7 + $0x70] sm:$0xff]
    %v274 = vld [vmem:[#allocation7 + $0x78] sm:$0xff]
    %275 = vmatprep.subr.mxu0 0.0
    %276 = vmatpush1.msra.mxu0 %v259
    %277 = vmatprep.subr.mxu0 0.0
    %278 = vmatpush1.msra.mxu0 %v260
    %279 = vmatprep.subr.mxu0 0.0
    %280 = vmatpush1.msra.mxu0 %v261
    %281 = vmatprep.subr.mxu0 0.0
    %282 = vmatpush1.msra.mxu0 %v262
    %283 = vmatprep.subr.mxu0 0.0
    %284 = vmatpush1.msra.mxu0 %v263
    %285 = vmatprep.subr.mxu0 0.0
    %286 = vmatpush1.msra.mxu0 %v264
    %287 = vmatprep.subr.mxu0 0.0
    %288 = vmatpush1.msra.mxu0 %v265
    %289 = vmatprep.subr.mxu0 0.0
    %290 = vmatpush1.msra.mxu0 %v266
    %291 = vmatprep.subr.mxu0 0.0
    %292 = vmatpush1.msra.mxu0 %v267
    %293 = vmatprep.subr.mxu0 0.0
    %294 = vmatpush1.msra.mxu0 %v268
    %295 = vmatprep.subr.mxu0 0.0
    %296 = vmatpush1.msra.mxu0 %v269
    %297 = vmatprep.subr.mxu0 0.0
    %298 = vmatpush1.msra.mxu0 %v270
    %299 = vmatprep.subr.mxu0 0.0
    %300 = vmatpush1.msra.mxu0 %v271
    %301 = vmatprep.subr.mxu0 0.0
    %302 = vmatpush1.msra.mxu0 %v272
    %303 = vmatprep.subr.mxu0 0.0
    %304 = vmatpush1.msra.mxu0 %v273
    %305 = vmatprep.subr.mxu0 0.0
    %306 = vmatpush1.msra.mxu0 %v274
    %307 = vmatprep.subr.mxu0 0.0
    %308 = vmatpush1.msra.mxu0 0.0
    %309 = vmatprep.subr.mxu0 0.0
    %310 = vmatpush1.msra.mxu0 0.0
    %311 = vmatprep.subr.mxu0 0.0
    %312 = vmatpush1.msra.mxu0 0.0
    %313 = vmatprep.subr.mxu0 0.0
    %314 = vmatpush1.msra.mxu0 0.0
    %315 = vmatprep.subr.mxu0 0.0
    %316 = vmatpush1.msra.mxu0 0.0
    %317 = vmatprep.subr.mxu0 0.0
    %318 = vmatpush1.msra.mxu0 0.0
    %319 = vmatprep.subr.mxu0 0.0
    %320 = vmatpush1.msra.mxu0 0.0
    %321 = vmatprep.subr.mxu0 0.0
    %322 = vmatpush1.msra.mxu0 0.0
    %323 = vmatprep.subr.mxu0 0.0
    %324 = vmatpush1.msra.mxu0 0.0
    %325 = vmatprep.subr.mxu0 0.0
    %326 = vmatpush1.msra.mxu0 0.0
    %327 = vmatprep.subr.mxu0 0.0
    %328 = vmatpush1.msra.mxu0 0.0
    %329 = vmatprep.subr.mxu0 0.0
    %330 = vmatpush1.msra.mxu0 0.0
    %331 = vmatprep.subr.mxu0 0.0
    %332 = vmatpush1.msra.mxu0 0.0
    %333 = vmatprep.subr.mxu0 0.0
    %334 = vmatpush1.msra.mxu0 0.0
    %335 = vmatprep.subr.mxu0 0.0
    %336 = vmatpush1.msra.mxu0 0.0
    %337 = vmatprep.subr.mxu0 0.0
    %338 = vmatpush1.msra.mxu0 0.0
    %339 = vmatprep.mubr.f32.mxu0 0.0
    %340 = vmatmul.mubr.f32.gmra.mrb[0].mxu0 %v258
    %v341 = vpop.f32.mrb[0].mxu0
    %v342 = vadd.f32 0.0, %v341
    %v343 = vpop.f32.mrb[0].mxu0
    %344 = vdwg.mxu0
    %v345 = vld [vmem:[%s5] sm:$0x1]
    %v346 = vld [vmem:[%s6] sm:$0x1]
    %v347 = vrot.slane %v342, 4
    %v348 = vadd.f32 %v342, %v347
    %v349 = vrot.slane %v348, 2
    %v350 = vadd.f32 %v348, %v349
    %v351 = vrot.slane %v350, 1
    %v352 = vadd.f32 %v350, %v351
    %v353 = vmul.f32 %v342, %v342
    %v354 = vrot.slane %v353, 4
    %v355 = vadd.f32 %v353, %v354
    %v356 = vrot.slane %v355, 2
    %v357 = vadd.f32 %v355, %v356
    %v358 = vrot.slane %v357, 1
    %v359 = vadd.f32 %v357, %v358
    %v360 = vmul.f32 %v352, 0.125
    %v361 = vmul.f32 %v359, 0.125
    %v362 = vmul.f32 %v360, %v360
    %v363 = vsub.f32 %v361, %v362
    %v364 = vmax.f32 %v363, 0.0
    %v365 = vadd.f32 %v364, 1e-05
    %v366 = vrsqrt.pop %v365
    %v367 = vmul.f32 %v345, %v366
    %v368 = vmul.f32 %v360, %v367
    %v369 = vsub.f32 %v346, %v368
    %v371 = vlaneseq
    %v372 = vshrl.u32 %v371, 7
    %v373 = vsub.s32 0, %v372
    %v374 = vrot.slane %v367, %v373
    %v376 = vmul.f32 %v342, %v374
    %v378 = vlaneseq
    %v379 = vshrl.u32 %v378, 7
    %v380 = vsub.s32 0, %v379
    %v381 = vrot.slane %v369, %v380
    %v383 = vadd.f32 %v376, %v381
    %v384 = vadd.f32 %v383, %v257
    %v385 = vmax.f32 %v384, 0.0
    %386 = vst [vmem:[#allocation8] sm:$0xff] %v385
    // Predicated region
    $region42: #{residual_block_forward.1} parent=1 // pred_check
      _
    $region43: #{residual_block_forward.1} parent=1 // pred_check_branch
      %388 = sbr.rel (0) target = $region45
    $region44: #{residual_block_forward.1} parent=1 // pred_region
      %s390 = ssub.s32 128, 128
      %391 = vsyncadd [#allocation4], %s390
      %s393 = sshll.u32 [#allocation8], 4
      %s394 = int_to_ptr.vmem [resolvable:$true] %s393
      %396 = dma.vmem_to_hbm [thread:$0]  %s394, 128, %s7, [#allocation4]
    $region45: #{residual_block_forward.1} parent=1 // pred_fallthru
      _
    // Predicated region
    $region46: #{residual_block_forward.1} parent=1 // pred_check
      _
    $region47: #{residual_block_forward.1} parent=1 // pred_check_branch
      %398 = sbr.rel (0) target = $region49
    $region48: #{residual_block_forward.1} parent=1 // pred_region
      %399 = dma.done [#allocation4], 128
    $region49: #{residual_block_forward.1} parent=1 // pred_fallthru
      _
    %400 = vsyncpa [#allocation3], 1
    %401 = vsyncpa [#allocation6], 1
    %402 = vsyncpa [#allocation4], 1

</llo_original>
